<compile_context>
chip_gen: v7x
topology: tpu7x:2x2x1
jax: 0.10.0
libtpu: 0.0.40
codegen_flags: <defaults>
</compile_context>

<pallas_src>
import jax
import jax.numpy as jnp
from jax.experimental import pallas as pl
from jax.experimental.pallas import tpu as pltpu

LN_EPS = 1e-5  # PyTorch nn.LayerNorm default


def _make_kernel(rsub, n_sub):
    """Kernel over one (tb, H) row tile, processed in n_sub sub-tiles of rsub rows."""

    def kernel(x_ref, w1_ref, b1_ref, g_ref, beta_ref,
               w2_ref, b2_ref, w3_ref, b3_ref, o_ref):
        w1 = w1_ref[...]            # (H, 256)   f32 or bf16
        w2 = w2_ref[...]            # (256, 32)
        w3 = w3_ref[...]            # (32, O_pad)
        b1 = b1_ref[...]            # (1, 256)   f32
        b2 = b2_ref[...]            # (1, 32)    f32
        b3 = b3_ref[...]            # (1, O_pad) f32
        g = g_ref[...]              # (1, 256)   f32
        beta = beta_ref[...]        # (1, 256)   f32

        def run(r):
            # Linear(H, 256) on the MXU (bf16 operands, f32 accumulate).
            x = x_ref[pl.ds(r, rsub), :].astype(w1.dtype)
            h1 = jnp.dot(x, w1, preferred_element_type=jnp.float32) + b1

            # LayerNorm(256): single-pass stats, var = E[x^2] - mean^2 (f32).
            mean = jnp.mean(h1, axis=-1, keepdims=True)
            ex2 = jnp.mean(h1 * h1, axis=-1, keepdims=True)
            var = ex2 - mean * mean
            h1 = (h1 - mean) * jax.lax.rsqrt(var + LN_EPS) * g + beta

            # ReLU; Dropout(0.05) is identity in eval mode.
            # TODO(synk): training-mode stochastic dropout (pltpu.prng_random_bits).
            h1 = jnp.maximum(h1, 0.0).astype(w2.dtype)

            # Linear(256, 32) + ReLU
            h2 = jnp.dot(h1, w2, preferred_element_type=jnp.float32) + b2
            h2 = jnp.maximum(h2, 0.0).astype(w3.dtype)

            # Linear(32, O_pad)  (lane-dense, padded columns are zero)
            out = jnp.dot(h2, w3, preferred_element_type=jnp.float32) + b3
            o_ref[pl.ds(r, rsub), :] = out.astype(o_ref.dtype)

        if n_sub == 1:
            run(0)
        else:
            def body(s, carry):
                run(pl.multiple_of(s * rsub, rsub))
                return carry
            jax.lax.fori_loop(0, n_sub, body, 0, unroll=True)

    return kernel


def _default_tb(B):
    """Fill the MXU M-dim (up to 256 rows) while keeping >= 2 grid steps when
    the batch allows, so the 'parallel' axis can shard across v7x's 2 TCs."""
    if B <= 8:
        return B
    half = (B + 1) // 2
    return max(8, min(256, ((half + 7) // 8) * 8))


def fchead_forward(x, params, *, tb=None, use_bf16_matmul=True):
    """x: (B, H) float32. params: dict of weights (see init_params)."""
    B, H = x.shape
    O = params["w3"].shape[1]
    O_pad = ((O + 127) // 128) * 128          # lane-dense output block width

    if tb is None:
        tb = _default_tb(B)
    # sub-tile rows to bound vreg pressure of the (rows, 256) f32 LN chain
    rsub = 128 if (tb > 128 and tb % 128 == 0) else tb
    n_sub = tb // rsub

    # Pad the last projection to the lane-dense width (zeros -> exact result).
    w3p = jnp.pad(params["w3"], ((0, 0), (0, O_pad - O)))
    b3p = jnp.pad(params["b3"], ((0, 0), (0, O_pad - O)))

    if use_bf16_matmul:
        w1 = params["w1"].astype(jnp.bfloat16)
        w2 = params["w2"].astype(jnp.bfloat16)
        w3p = w3p.astype(jnp.bfloat16)
    else:
        w1, w2 = params["w1"], params["w2"]

    b1, g, beta, b2 = params["b1"], params["ln_g"], params["ln_b"], params["b2"]

    grid = (pl.cdiv(B, tb),)
    full2d = lambda a: pl.BlockSpec(a.shape, lambda i: (0, 0))

    weight_bytes = sum(int(a.size) * a.dtype.itemsize
                       for a in (w1, b1, g, beta, w2, b2, w3p, b3p))
    cost = pl.CostEstimate(
        flops=2 * B * (H * 256 + 256 * 32 + 32 * O_pad) + 8 * B * 256,
        transcendentals=B,  # one rsqrt per row
        bytes_accessed=int(x.size) * x.dtype.itemsize + 4 * B * O_pad + weight_bytes,
    )

    out = pl.pallas_call(
        _make_kernel(rsub, n_sub),
        out_shape=jax.ShapeDtypeStruct((B, O_pad), x.dtype),
        grid_spec=pltpu.PrefetchScalarGridSpec(
            num_scalar_prefetch=0,
            grid=grid,
            in_specs=[
                pl.BlockSpec((tb, H), lambda i: (i, 0)),      # x row tile
                full2d(w1), full2d(b1), full2d(g), full2d(beta),
                full2d(w2), full2d(b2), full2d(w3p), full2d(b3p),
            ],
            out_specs=pl.BlockSpec((tb, O_pad), lambda i: (i, 0)),
        ),
        compiler_params=pltpu.CompilerParams(
            dimension_semantics=("parallel",)),
        cost_estimate=cost,
    )(x, w1, b1, g, beta, w2, b2, w3p, b3p)

    return out[:, :O]


def init_params(key, lstm_hidden_size, output_size):
    """Deterministic synthetic parameters matching FChead.__init__ shapes.
    Biases / LN params kept 2D (1, N) for TPU-friendly layout."""
    ks = jax.random.split(key, 3)

    def lin(k, fan_in, fan_out):
        bound = 1.0 / jnp.sqrt(fan_in)
        kw, kb = jax.random.split(k)
        w = jax.random.uniform(kw, (fan_in, fan_out), jnp.float32, -bound, bound)
        b = jax.random.uniform(kb, (1, fan_out), jnp.float32, -bound, bound)
        return w, b

    w1, b1 = lin(ks[0], lstm_hidden_size, 256)
    w2, b2 = lin(ks[1], 256, 32)
    w3, b3 = lin(ks[2], 32, output_size)
    return {
        "w1": w1, "b1": b1,
        "ln_g": jnp.ones((1, 256), jnp.float32),
        "ln_b": jnp.zeros((1, 256), jnp.float32),
        "w2": w2, "b2": b2,
        "w3": w3, "b3": b3,
    }


def fchead_ref(x, p, dot_dtype=jnp.float32):
    """Pure-JAX reference. dot_dtype lets us mirror the bf16-MXU fast path."""
    dd = lambda a, b: jnp.dot(a.astype(dot_dtype), b.astype(dot_dtype),
                              preferred_element_type=jnp.float32)
    h1 = dd(x, p["w1"]) + p["b1"]
    mean = jnp.mean(h1, -1, keepdims=True)
    var = jnp.mean((h1 - mean) ** 2, -1, keepdims=True)
    h1 = (h1 - mean) * jax.lax.rsqrt(var + LN_EPS) * p["ln_g"] + p["ln_b"]
    h1 = jnp.maximum(h1, 0.0)
    h2 = jnp.maximum(dd(h1, p["w2"]) + p["b2"], 0.0)
    return dd(h2, p["w3"]) + p["b3"]


if __name__ == "__main__":
    key = jax.random.PRNGKey(0)
    k_x, k_p, k_x2 = jax.random.split(key, 3)

    batch, lstm_hidden_size, output_size = 8, 32, 8
    x = jax.random.normal(k_x, (batch, lstm_hidden_size), jnp.float32)
    params = init_params(k_p, lstm_hidden_size, output_size)

    # 1) f32-MXU path: tight check against the pure-JAX f32 reference.
    out_f32 = jax.block_until_ready(fchead_forward(x, params, use_bf16_matmul=False))
    assert out_f32.shape == (batch, output_size)
    assert jnp.allclose(out_f32, fchead_ref(x, params), atol=1e-4, rtol=1e-4)

    # 2) bf16-MXU fast path (default): check against a bf16-dot reference.
    out_bf16 = jax.block_until_ready(fchead_forward(x, params))
    assert out_bf16.shape == (batch, output_size)
    assert jnp.allclose(out_bf16, fchead_ref(x, params, dot_dtype=jnp.bfloat16),
                        atol=5e-3, rtol=5e-3)

    # 3) Larger batch: exercises multi-step grid, tb=256 with the 128-row
    #    sub-tile fori_loop, and a partial last row block.
    B2 = 384
    x2 = jax.random.normal(k_x2, (B2, lstm_hidden_size), jnp.float32)
    out2 = jax.block_until_ready(fchead_forward(x2, params, tb=256))
    assert out2.shape == (B2, output_size)
    assert jnp.allclose(out2, fchead_ref(x2, params, dot_dtype=jnp.bfloat16),
                        atol=5e-3, rtol=5e-3)

    print("KERNEL_OK")
</pallas_src>

<mosaic_0001>
module attributes {stable_mosaic.version = 11 : i64} {
  func.func @kernel(%arg0: i32, %arg1: memref<8x32xf32, #tpu.memory_space<vmem>>, %arg2: memref<32x256xf32, #tpu.memory_space<vmem>>, %arg3: memref<1x256xf32, #tpu.memory_space<vmem>>, %arg4: memref<1x256xf32, #tpu.memory_space<vmem>>, %arg5: memref<1x256xf32, #tpu.memory_space<vmem>>, %arg6: memref<256x32xf32, #tpu.memory_space<vmem>>, %arg7: memref<1x32xf32, #tpu.memory_space<vmem>>, %arg8: memref<32x128xf32, #tpu.memory_space<vmem>>, %arg9: memref<1x128xf32, #tpu.memory_space<vmem>>, %arg10: memref<8x128xf32, #tpu.memory_space<vmem>>) attributes {dimension_semantics = [#tpu.dimension_semantics<parallel>], iteration_bounds = array<i64: 1>, scalar_prefetch = 0 : i64, scratch_operands = 0 : i64, tpu.core_type = #tpu.core_type<tc>, window_params = [{transform_indices = @transform_0, window_bounds = array<i64: 8, 32>}, {pipeline_mode = #tpu.pipeline_mode<synchronous>, transform_indices = @transform_1, window_bounds = array<i64: 32, 256>}, {pipeline_mode = #tpu.pipeline_mode<synchronous>, transform_indices = @transform_2, window_bounds = array<i64: 1, 256>}, {pipeline_mode = #tpu.pipeline_mode<synchronous>, transform_indices = @transform_3, window_bounds = array<i64: 1, 256>}, {pipeline_mode = #tpu.pipeline_mode<synchronous>, transform_indices = @transform_4, window_bounds = array<i64: 1, 256>}, {pipeline_mode = #tpu.pipeline_mode<synchronous>, transform_indices = @transform_5, window_bounds = array<i64: 256, 32>}, {pipeline_mode = #tpu.pipeline_mode<synchronous>, transform_indices = @transform_6, window_bounds = array<i64: 1, 32>}, {pipeline_mode = #tpu.pipeline_mode<synchronous>, transform_indices = @transform_7, window_bounds = array<i64: 32, 128>}, {pipeline_mode = #tpu.pipeline_mode<synchronous>, transform_indices = @transform_8, window_bounds = array<i64: 1, 128>}, {transform_indices = @transform_9, window_bounds = array<i64: 8, 128>}]} {
    %c0 = arith.constant 0 : index
    %c0_0 = arith.constant 0 : index
    %0 = vector.load %arg2[%c0, %c0_0] : memref<32x256xf32, #tpu.memory_space<vmem>>, vector<32x256xf32>
    %c0_1 = arith.constant 0 : index
    %c0_2 = arith.constant 0 : index
    %1 = vector.load %arg6[%c0_1, %c0_2] : memref<256x32xf32, #tpu.memory_space<vmem>>, vector<256x32xf32>
    %c0_3 = arith.constant 0 : index
    %c0_4 = arith.constant 0 : index
    %2 = vector.load %arg8[%c0_3, %c0_4] : memref<32x128xf32, #tpu.memory_space<vmem>>, vector<32x128xf32>
    %c0_5 = arith.constant 0 : index
    %c0_6 = arith.constant 0 : index
    %3 = vector.load %arg3[%c0_5, %c0_6] : memref<1x256xf32, #tpu.memory_space<vmem>>, vector<1x256xf32>
    %c0_7 = arith.constant 0 : index
    %c0_8 = arith.constant 0 : index
    %4 = vector.load %arg7[%c0_7, %c0_8] : memref<1x32xf32, #tpu.memory_space<vmem>>, vector<1x32xf32>
    %c0_9 = arith.constant 0 : index
    %c0_10 = arith.constant 0 : index
    %5 = vector.load %arg9[%c0_9, %c0_10] : memref<1x128xf32, #tpu.memory_space<vmem>>, vector<1x128xf32>
    %c0_11 = arith.constant 0 : index
    %c0_12 = arith.constant 0 : index
    %6 = vector.load %arg4[%c0_11, %c0_12] : memref<1x256xf32, #tpu.memory_space<vmem>>, vector<1x256xf32>
    %c0_13 = arith.constant 0 : index
    %c0_14 = arith.constant 0 : index
    %7 = vector.load %arg5[%c0_13, %c0_14] : memref<1x256xf32, #tpu.memory_space<vmem>>, vector<1x256xf32>
    %c0_15 = arith.constant 0 : index
    %c0_16 = arith.constant 0 : index
    %8 = vector.load %arg1[%c0_15, %c0_16] : memref<8x32xf32, #tpu.memory_space<vmem>>, vector<8x32xf32>
    %cst = arith.constant dense<0.000000e+00> : vector<8x256xf32>
    %9 = tpu.matmul %8, %0, %cst {dimension_numbers = #tpu.dot_dimension_numbers<[1], [0], [0], [1], [0, 0, 1, 1], [], []>} : vector<8x32xf32>, vector<32x256xf32>, vector<8x256xf32> -> vector<8x256xf32>
    %10 = vector.broadcast %3 : vector<1x256xf32> to vector<8x256xf32>
    %11 = arith.addf %9, %10 : vector<8x256xf32>
    %cst_17 = arith.constant dense<0.000000e+00> : vector<8xf32>
    %12 = vector.multi_reduction <add>, %11, %cst_17 [1] : vector<8x256xf32> to vector<8xf32>
    %13 = vector.shape_cast %12 : vector<8xf32> to vector<8x1xf32>
    %cst_18 = arith.constant 2.560000e+02 : f32
    %14 = vector.broadcast %cst_18 : f32 to vector<8x1xf32>
    %15 = arith.divf %13, %14 : vector<8x1xf32>
    %16 = arith.mulf %11, %11 : vector<8x256xf32>
    %cst_19 = arith.constant dense<0.000000e+00> : vector<8xf32>
    %17 = vector.multi_reduction <add>, %16, %cst_19 [1] : vector<8x256xf32> to vector<8xf32>
    %18 = vector.shape_cast %17 : vector<8xf32> to vector<8x1xf32>
    %cst_20 = arith.constant 2.560000e+02 : f32
    %19 = vector.broadcast %cst_20 : f32 to vector<8x1xf32>
    %20 = arith.divf %18, %19 : vector<8x1xf32>
    %21 = arith.mulf %15, %15 : vector<8x1xf32>
    %22 = arith.subf %20, %21 : vector<8x1xf32>
    %23 = vector.broadcast %15 : vector<8x1xf32> to vector<8x256xf32>
    %24 = arith.subf %11, %23 : vector<8x256xf32>
    %cst_21 = arith.constant 9.99999974E-6 : f32
    %25 = vector.broadcast %cst_21 : f32 to vector<8x1xf32>
    %26 = arith.addf %22, %25 : vector<8x1xf32>
    %27 = math.rsqrt %26 : vector<8x1xf32>
    %28 = vector.broadcast %27 : vector<8x1xf32> to vector<8x256xf32>
    %29 = arith.mulf %24, %28 : vector<8x256xf32>
    %30 = vector.broadcast %6 : vector<1x256xf32> to vector<8x256xf32>
    %31 = arith.mulf %29, %30 : vector<8x256xf32>
    %32 = vector.broadcast %7 : vector<1x256xf32> to vector<8x256xf32>
    %33 = arith.addf %31, %32 : vector<8x256xf32>
    %cst_22 = arith.constant 0.000000e+00 : f32
    %34 = vector.broadcast %cst_22 : f32 to vector<8x256xf32>
    %35 = arith.maximumf %33, %34 : vector<8x256xf32>
    %cst_23 = arith.constant dense<0.000000e+00> : vector<8x32xf32>
    %36 = tpu.matmul %35, %1, %cst_23 {dimension_numbers = #tpu.dot_dimension_numbers<[1], [0], [0], [1], [0, 0, 1, 1], [], []>} : vector<8x256xf32>, vector<256x32xf32>, vector<8x32xf32> -> vector<8x32xf32>
    %37 = vector.broadcast %4 : vector<1x32xf32> to vector<8x32xf32>
    %38 = arith.addf %36, %37 : vector<8x32xf32>
    %cst_24 = arith.constant 0.000000e+00 : f32
    %39 = vector.broadcast %cst_24 : f32 to vector<8x32xf32>
    %40 = arith.maximumf %38, %39 : vector<8x32xf32>
    %cst_25 = arith.constant dense<0.000000e+00> : vector<8x128xf32>
    %41 = tpu.matmul %40, %2, %cst_25 {dimension_numbers = #tpu.dot_dimension_numbers<[1], [0], [0], [1], [0, 0, 1, 1], [], []>} : vector<8x32xf32>, vector<32x128xf32>, vector<8x128xf32> -> vector<8x128xf32>
    %42 = vector.broadcast %5 : vector<1x128xf32> to vector<8x128xf32>
    %43 = arith.addf %41, %42 : vector<8x128xf32>
    %c0_26 = arith.constant 0 : index
    %c0_27 = arith.constant 0 : index
    %44 = vector.load %arg10[%c0_26, %c0_27] : memref<8x128xf32, #tpu.memory_space<vmem>>, vector<8x128xf32>
    tpu.vector_store %arg10[%c0_26, %c0_27], %43 {strides = array<i32>} : memref<8x128xf32, #tpu.memory_space<vmem>>, vector<8x128xf32>,
    return
  }
  func.func @transform_0(%arg0: i32) -> (i32, i32) {
    %c0_i32 = arith.constant 0 : i32
    %c0_i32_0 = arith.constant 0 : i32
    return %arg0, %c0_i32 : i32, i32
  }
  func.func @transform_1(%arg0: i32) -> (i32, i32) {
    %c0_i32 = arith.constant 0 : i32
    %c0_i32_0 = arith.constant 0 : i32
    %c0_i32_1 = arith.constant 0 : i32
    return %c0_i32, %c0_i32_0 : i32, i32
  }
  func.func @transform_2(%arg0: i32) -> (i32, i32) {
    %c0_i32 = arith.constant 0 : i32
    %c0_i32_0 = arith.constant 0 : i32
    %c0_i32_1 = arith.constant 0 : i32
    return %c0_i32, %c0_i32_0 : i32, i32
  }
  func.func @transform_3(%arg0: i32) -> (i32, i32) {
    %c0_i32 = arith.constant 0 : i32
    %c0_i32_0 = arith.constant 0 : i32
    %c0_i32_1 = arith.constant 0 : i32
    return %c0_i32, %c0_i32_0 : i32, i32
  }
  func.func @transform_4(%arg0: i32) -> (i32, i32) {
    %c0_i32 = arith.constant 0 : i32
    %c0_i32_0 = arith.constant 0 : i32
    %c0_i32_1 = arith.constant 0 : i32
    return %c0_i32, %c0_i32_0 : i32, i32
  }
  func.func @transform_5(%arg0: i32) -> (i32, i32) {
    %c0_i32 = arith.constant 0 : i32
    %c0_i32_0 = arith.constant 0 : i32
    %c0_i32_1 = arith.constant 0 : i32
    return %c0_i32, %c0_i32_0 : i32, i32
  }
  func.func @transform_6(%arg0: i32) -> (i32, i32) {
    %c0_i32 = arith.constant 0 : i32
    %c0_i32_0 = arith.constant 0 : i32
    %c0_i32_1 = arith.constant 0 : i32
    return %c0_i32, %c0_i32_0 : i32, i32
  }
  func.func @transform_7(%arg0: i32) -> (i32, i32) {
    %c0_i32 = arith.constant 0 : i32
    %c0_i32_0 = arith.constant 0 : i32
    %c0_i32_1 = arith.constant 0 : i32
    return %c0_i32, %c0_i32_0 : i32, i32
  }
  func.func @transform_8(%arg0: i32) -> (i32, i32) {
    %c0_i32 = arith.constant 0 : i32
    %c0_i32_0 = arith.constant 0 : i32
    %c0_i32_1 = arith.constant 0 : i32
    return %c0_i32, %c0_i32_0 : i32, i32
  }
  func.func @transform_9(%arg0: i32) -> (i32, i32) {
    %c0_i32 = arith.constant 0 : i32
    %c0_i32_0 = arith.constant 0 : i32
    return %arg0, %c0_i32 : i32, i32
  }
}

</mosaic_0001>

<llo_original>
// kernel: tpu_custom_call.1
$region0: #{tpu_custom_call.1}
  #allocation0 [shape = 'u32[]', space=smem, size = 0x4, offset = 0x4, fixed_abs, tag = 'smem constant byte address 0x4 - core index']
  #allocation1 [shape = 'u32[144,128]{1,0:T(1,128)}', space=vmem, size = 0x12000, scoped, tag = 'internal scratch']
  %s0 = inlined_call_operand.vmem [shape: f32[8,32], index: 0, kind: input, shape index: {}]
  %s1 = inlined_call_operand.vmem [shape: f32[32,256], index: 1, kind: input, shape index: {}]
  %s2 = inlined_call_operand.vmem [shape: f32[1,256], index: 2, kind: input, shape index: {}]
  %s3 = inlined_call_operand.vmem [shape: f32[1,256], index: 3, kind: input, shape index: {}]
  %s4 = inlined_call_operand.vmem [shape: f32[1,256], index: 4, kind: input, shape index: {}]
  %s5 = inlined_call_operand.vmem [shape: f32[256,32], index: 5, kind: input, shape index: {}]
  %s6 = inlined_call_operand.vmem [shape: f32[1,32], index: 6, kind: input, shape index: {}]
  %s7 = inlined_call_operand.vmem [shape: f32[32,128], index: 7, kind: input, shape index: {}]
  %s8 = inlined_call_operand.vmem [shape: f32[1,128], index: 8, kind: input, shape index: {}]
  %s9 = inlined_call_operand.hbm [shape: f32[8,128], index: 9, kind: output, shape index: {}]
  %s10 = sld [smem:[#allocation0]]
  $region46: #{tpu_custom_call.1} parent=0
    _
  %s12 = ssub.s32 1, %s10
  %s13 = scalar_select 0, %s12, %s10
  $region1: #{tpu_custom_call.1} parent=0
    #allocation2 [shape = 'u8[4096]{0}', space=vmem, size = 0x1000, scoped, tag = 'output window, operand 0, single buffered']
    #allocation3 [shape = 's32[1]{0}', space=sflag, size = 0x4, scoped, tag = 'scoped memory for tpu_custom_call.1']
    %14 = vsyncpa [#allocation3], 0
    // Predicated region
    $region2: #{tpu_custom_call.1} parent=1 // pred_check
      _
    $region3: #{tpu_custom_call.1} parent=1 // pred_check_branch
      %16 = sbr.rel (0) target = $region5
    $region4: #{tpu_custom_call.1} parent=1 // pred_region
      _
    $region5: #{tpu_custom_call.1} parent=1 // pred_fallthru
      _
    // Predicated region
    $region6: #{tpu_custom_call.1} parent=1 // pred_check
      _
    $region7: #{tpu_custom_call.1} parent=1 // pred_check_branch
      %18 = sbr.rel (0) target = $region9
    $region8: #{tpu_custom_call.1} parent=1 // pred_region
      _
    $region9: #{tpu_custom_call.1} parent=1 // pred_fallthru
      _
    // Predicated region
    $region10: #{tpu_custom_call.1} parent=1 // pred_check
      _
    $region11: #{tpu_custom_call.1} parent=1 // pred_check_branch
      %20 = sbr.rel (0) target = $region13
    $region12: #{tpu_custom_call.1} parent=1 // pred_region
      _
    $region13: #{tpu_custom_call.1} parent=1 // pred_fallthru
      _
    // Predicated region
    $region14: #{tpu_custom_call.1} parent=1 // pred_check
      _
    $region15: #{tpu_custom_call.1} parent=1 // pred_check_branch
      %22 = sbr.rel (0) target = $region17
    $region16: #{tpu_custom_call.1} parent=1 // pred_region
      _
    $region17: #{tpu_custom_call.1} parent=1 // pred_fallthru
      _
    // Predicated region
    $region18: #{tpu_custom_call.1} parent=1 // pred_check
      _
    $region19: #{tpu_custom_call.1} parent=1 // pred_check_branch
      %24 = sbr.rel (0) target = $region21
    $region20: #{tpu_custom_call.1} parent=1 // pred_region
      _
    $region21: #{tpu_custom_call.1} parent=1 // pred_fallthru
      _
    // Predicated region
    $region22: #{tpu_custom_call.1} parent=1 // pred_check
      _
    $region23: #{tpu_custom_call.1} parent=1 // pred_check_branch
      %26 = sbr.rel (0) target = $region25
    $region24: #{tpu_custom_call.1} parent=1 // pred_region
      _
    $region25: #{tpu_custom_call.1} parent=1 // pred_fallthru
      _
    // Predicated region
    $region26: #{tpu_custom_call.1} parent=1 // pred_check
      _
    $region27: #{tpu_custom_call.1} parent=1 // pred_check_branch
      %28 = sbr.rel (0) target = $region29
    $region28: #{tpu_custom_call.1} parent=1 // pred_region
      _
    $region29: #{tpu_custom_call.1} parent=1 // pred_fallthru
      _
    // Predicated region
    $region30: #{tpu_custom_call.1} parent=1 // pred_check
      _
    $region31: #{tpu_custom_call.1} parent=1 // pred_check_branch
      %30 = sbr.rel (0) target = $region33
    $region32: #{tpu_custom_call.1} parent=1 // pred_region
      _
    $region33: #{tpu_custom_call.1} parent=1 // pred_fallthru
      _
    // Predicated region
    $region34: #{tpu_custom_call.1} parent=1 // pred_check
      _
    $region35: #{tpu_custom_call.1} parent=1 // pred_check_branch
      %32 = sbr.rel (0) target = $region37
    $region36: #{tpu_custom_call.1} parent=1 // pred_region
      _
    $region37: #{tpu_custom_call.1} parent=1 // pred_fallthru
      _
    %v33 = vld [vmem:[%s1] sm:$0xff]
    %v34 = vld [vmem:[%s1 + $0x8] sm:$0xff]
    %v35 = vld [vmem:[%s1 + $0x10] sm:$0xff]
    %v36 = vld [vmem:[%s1 + $0x18] sm:$0xff]
    %v37 = vld [vmem:[%s1 + $0x20] sm:$0xff]
    %v38 = vld [vmem:[%s1 + $0x28] sm:$0xff]
    %v39 = vld [vmem:[%s1 + $0x30] sm:$0xff]
    %v40 = vld [vmem:[%s1 + $0x38] sm:$0xff]
    %v41 = vld [vmem:[%s5] sm:$0xff]
    %v42 = vld [vmem:[%s5 + $0x8] sm:$0xff]
    %v43 = vld [vmem:[%s5 + $0x10] sm:$0xff]
    %v44 = vld [vmem:[%s5 + $0x18] sm:$0xff]
    %v45 = vld [vmem:[%s5 + $0x20] sm:$0xff]
    %v46 = vld [vmem:[%s5 + $0x28] sm:$0xff]
    %v47 = vld [vmem:[%s5 + $0x30] sm:$0xff]
    %v48 = vld [vmem:[%s5 + $0x38] sm:$0xff]
    %v49 = vld [vmem:[%s5 + $0x40] sm:$0xff]
    %v50 = vld [vmem:[%s5 + $0x48] sm:$0xff]
    %v51 = vld [vmem:[%s5 + $0x50] sm:$0xff]
    %v52 = vld [vmem:[%s5 + $0x58] sm:$0xff]
    %v53 = vld [vmem:[%s5 + $0x60] sm:$0xff]
    %v54 = vld [vmem:[%s5 + $0x68] sm:$0xff]
    %v55 = vld [vmem:[%s5 + $0x70] sm:$0xff]
    %v56 = vld [vmem:[%s5 + $0x78] sm:$0xff]
    %v57 = vld [vmem:[%s5 + $0x80] sm:$0xff]
    %v58 = vld [vmem:[%s5 + $0x88] sm:$0xff]
    %v59 = vld [vmem:[%s5 + $0x90] sm:$0xff]
    %v60 = vld [vmem:[%s5 + $0x98] sm:$0xff]
    %v61 = vld [vmem:[%s5 + $0xa0] sm:$0xff]
    %v62 = vld [vmem:[%s5 + $0xa8] sm:$0xff]
    %v63 = vld [vmem:[%s5 + $0xb0] sm:$0xff]
    %v64 = vld [vmem:[%s5 + $0xb8] sm:$0xff]
    %v65 = vld [vmem:[%s5 + $0xc0] sm:$0xff]
    %v66 = vld [vmem:[%s5 + $0xc8] sm:$0xff]
    %v67 = vld [vmem:[%s5 + $0xd0] sm:$0xff]
    %v68 = vld [vmem:[%s5 + $0xd8] sm:$0xff]
    %v69 = vld [vmem:[%s5 + $0xe0] sm:$0xff]
    %v70 = vld [vmem:[%s5 + $0xe8] sm:$0xff]
    %v71 = vld [vmem:[%s5 + $0xf0] sm:$0xff]
    %v72 = vld [vmem:[%s5 + $0xf8] sm:$0xff]
    %v73 = vld [vmem:[%s7] sm:$0xff]
    %v74 = vld [vmem:[%s7 + $0x8] sm:$0xff]
    %v75 = vld [vmem:[%s7 + $0x10] sm:$0xff]
    %v76 = vld [vmem:[%s7 + $0x18] sm:$0xff]
    %v77 = vld [vmem:[%s2] sm:$0x3]
    %v78 = vld [vmem:[%s6] sm:$0x1]
    %v79 = vld [vmem:[%s8] sm:$0x1]
    %v80 = vld [vmem:[%s3] sm:$0x3]
    %v81 = vld [vmem:[%s4] sm:$0x3]
    %v82 = vld [vmem:[%s0] sm:$0xff]
    %v84 = vlaneseq
    %v85 = vshrl.u32 %v84, 7
    %v86 = vsub.s32 0, %v85
    %v87 = vrot.slane %v77, %v86
    %v88 = vlaneseq
    %v89 = vshrl.u32 %v88, 7
    %v90 = vsub.s32 1, %v89
    %v91 = vrot.slane %v77, %v90
    %vm94 = vcmask 261120
    %v96 = vsel %vm94, %v82, 0
    %98 = vmatprep.subr.mxu0 %v34
    %99 = vmatpush1.msra.mxu0 %v33
    %100 = vmatprep.subr.mxu0 %v36
    %101 = vmatpush1.msra.mxu0 %v35
    %102 = vmatprep.subr.mxu0 %v38
    %103 = vmatpush1.msra.mxu0 %v37
    %104 = vmatprep.subr.mxu0 %v40
    %105 = vmatpush1.msra.mxu0 %v39
    %106 = vmatprep.subr.mxu0 0.0
    %107 = vmatpush1.msra.mxu0 0.0
    %108 = vmatprep.subr.mxu0 0.0
    %109 = vmatpush1.msra.mxu0 0.0
    %110 = vmatprep.subr.mxu0 0.0
    %111 = vmatpush1.msra.mxu0 0.0
    %112 = vmatprep.subr.mxu0 0.0
    %113 = vmatpush1.msra.mxu0 0.0
    %114 = vmatprep.subr.mxu0 0.0
    %115 = vmatpush1.msra.mxu0 0.0
    %116 = vmatprep.subr.mxu0 0.0
    %117 = vmatpush1.msra.mxu0 0.0
    %118 = vmatprep.subr.mxu0 0.0
    %119 = vmatpush1.msra.mxu0 0.0
    %120 = vmatprep.subr.mxu0 0.0
    %121 = vmatpush1.msra.mxu0 0.0
    %122 = vmatprep.subr.mxu0 0.0
    %123 = vmatpush1.msra.mxu0 0.0
    %124 = vmatprep.subr.mxu0 0.0
    %125 = vmatpush1.msra.mxu0 0.0
    %126 = vmatprep.subr.mxu0 0.0
    %127 = vmatpush1.msra.mxu0 0.0
    %128 = vmatprep.subr.mxu0 0.0
    %129 = vmatpush1.msra.mxu0 0.0
    %130 = vmatprep.subr.mxu0 0.0
    %131 = vmatpush1.msra.mxu0 0.0
    %132 = vmatprep.subr.mxu0 0.0
    %133 = vmatpush1.msra.mxu0 0.0
    %134 = vmatprep.subr.mxu0 0.0
    %135 = vmatpush1.msra.mxu0 0.0
    %136 = vmatprep.subr.mxu0 0.0
    %137 = vmatpush1.msra.mxu0 0.0
    %138 = vmatprep.subr.mxu0 0.0
    %139 = vmatpush1.msra.mxu0 0.0
    %140 = vmatprep.subr.mxu0 0.0
    %141 = vmatpush1.msra.mxu0 0.0
    %142 = vmatprep.subr.mxu0 0.0
    %143 = vmatpush1.msra.mxu0 0.0
    %144 = vmatprep.subr.mxu0 0.0
    %145 = vmatpush1.msra.mxu0 0.0
    %146 = vmatprep.subr.mxu0 0.0
    %147 = vmatpush1.msra.mxu0 0.0
    %148 = vmatprep.subr.mxu0 0.0
    %149 = vmatpush1.msra.mxu0 0.0
    %150 = vmatprep.subr.mxu0 0.0
    %151 = vmatpush1.msra.mxu0 0.0
    %152 = vmatprep.subr.mxu0 0.0
    %153 = vmatpush1.msra.mxu0 0.0
    %154 = vmatprep.subr.mxu0 0.0
    %155 = vmatpush1.msra.mxu0 0.0
    %156 = vmatprep.subr.mxu0 0.0
    %157 = vmatpush1.msra.mxu0 0.0
    %158 = vmatprep.subr.mxu0 0.0
    %159 = vmatpush1.msra.mxu0 0.0
    %160 = vmatprep.subr.mxu0 0.0
    %161 = vmatpush1.msra.mxu0 0.0
    %162 = vmatprep.mubr.f32.mxu0 0.0
    %163 = vmatmul.mubr.f32.gmra.mrb[0].mxu0 %v96
    %v164 = vpop.f32.mrb[0].mxu0
    %v165 = vadd.f32 %v87, %v164
    %v166 = vpop.f32.mrb[0].mxu0
    %v167 = vadd.f32 %v91, %v166
    %168 = vdwg.mxu0
    %v169 = vadd.f32 %v165, %v167
    %170 = vadd.xlane.f32.xlu0 %v169
    %v171 = vpop.xlane.xlu0 %170
    %v172 = vrcp.pop 256.0
    %v173 = vmul.f32 %v171, %v172
    %v174 = vmul.f32 %v165, %v165
    %v175 = vmul.f32 %v167, %v167
    %v176 = vadd.f32 %v174, %v175
    %177 = vadd.xlane.f32.xlu0 %v176
    %v178 = vpop.xlane.xlu0 %177
    %v179 = vmul.f32 %v178, %v172
    %v180 = vmul.f32 %v173, %v173
    %v181 = vsub.f32 %v179, %v180
    %v182 = vsub.f32 %v165, %v173
    %v183 = vsub.f32 %v167, %v173
    %v184 = vadd.f32 %v181, 1e-05
    %v185 = vrsqrt.pop %v184
    %v186 = vmul.f32 %v182, %v185
    %v187 = vmul.f32 %v183, %v185
    %v189 = vlaneseq
    %v190 = vshrl.u32 %v189, 7
    %v191 = vsub.s32 0, %v190
    %v192 = vrot.slane %v80, %v191
    %v193 = vlaneseq
    %v194 = vshrl.u32 %v193, 7
    %v195 = vsub.s32 1, %v194
    %v196 = vrot.slane %v80, %v195
    %v199 = vmul.f32 %v186, %v192
    %v200 = vmul.f32 %v187, %v196
    %v202 = vlaneseq
    %v203 = vshrl.u32 %v202, 7
    %v204 = vsub.s32 0, %v203
    %v205 = vrot.slane %v81, %v204
    %v206 = vlaneseq
    %v207 = vshrl.u32 %v206, 7
    %v208 = vsub.s32 1, %v207
    %v209 = vrot.slane %v81, %v208
    %v212 = vadd.f32 %v199, %v205
    %v213 = vadd.f32 %v200, %v209
    %v214 = vmax.f32 %v212, 0.0
    %v215 = vmax.f32 %v213, 0.0
    %v217 = vlaneseq
    %v218 = vshrl.u32 %v217, 7
    %v219 = vsub.s32 0, %v218
    %v220 = vrot.slane %v78, %v219
    %222 = vmatprep.subr.mxu0 0.0
    %223 = vmatpush1.msra.mxu0 %v41
    %224 = vmatprep.subr.mxu0 0.0
    %225 = vmatpush1.msra.mxu0 %v42
    %226 = vmatprep.subr.mxu0 0.0
    %227 = vmatpush1.msra.mxu0 %v43
    %228 = vmatprep.subr.mxu0 0.0
    %229 = vmatpush1.msra.mxu0 %v44
    %230 = vmatprep.subr.mxu0 0.0
    %231 = vmatpush1.msra.mxu0 %v45
    %232 = vmatprep.subr.mxu0 0.0
    %233 = vmatpush1.msra.mxu0 %v46
    %234 = vmatprep.subr.mxu0 0.0
    %235 = vmatpush1.msra.mxu0 %v47
    %236 = vmatprep.subr.mxu0 0.0
    %237 = vmatpush1.msra.mxu0 %v48
    %238 = vmatprep.subr.mxu0 0.0
    %239 = vmatpush1.msra.mxu0 %v49
    %240 = vmatprep.subr.mxu0 0.0
    %241 = vmatpush1.msra.mxu0 %v50
    %242 = vmatprep.subr.mxu0 0.0
    %243 = vmatpush1.msra.mxu0 %v51
    %244 = vmatprep.subr.mxu0 0.0
    %245 = vmatpush1.msra.mxu0 %v52
    %246 = vmatprep.subr.mxu0 0.0
    %247 = vmatpush1.msra.mxu0 %v53
    %248 = vmatprep.subr.mxu0 0.0
    %249 = vmatpush1.msra.mxu0 %v54
    %250 = vmatprep.subr.mxu0 0.0
    %251 = vmatpush1.msra.mxu0 %v55
    %252 = vmatprep.subr.mxu0 0.0
    %253 = vmatpush1.msra.mxu0 %v56
    %254 = vmatprep.subr.mxu0 0.0
    %255 = vmatpush1.msra.mxu0 %v57
    %256 = vmatprep.subr.mxu0 0.0
    %257 = vmatpush1.msra.mxu0 %v58
    %258 = vmatprep.subr.mxu0 0.0
    %259 = vmatpush1.msra.mxu0 %v59
    %260 = vmatprep.subr.mxu0 0.0
    %261 = vmatpush1.msra.mxu0 %v60
    %262 = vmatprep.subr.mxu0 0.0
    %263 = vmatpush1.msra.mxu0 %v61
    %264 = vmatprep.subr.mxu0 0.0
    %265 = vmatpush1.msra.mxu0 %v62
    %266 = vmatprep.subr.mxu0 0.0
    %267 = vmatpush1.msra.mxu0 %v63
    %268 = vmatprep.subr.mxu0 0.0
    %269 = vmatpush1.msra.mxu0 %v64
    %270 = vmatprep.subr.mxu0 0.0
    %271 = vmatpush1.msra.mxu0 %v65
    %272 = vmatprep.subr.mxu0 0.0
    %273 = vmatpush1.msra.mxu0 %v66
    %274 = vmatprep.subr.mxu0 0.0
    %275 = vmatpush1.msra.mxu0 %v67
    %276 = vmatprep.subr.mxu0 0.0
    %277 = vmatpush1.msra.mxu0 %v68
    %278 = vmatprep.subr.mxu0 0.0
    %279 = vmatpush1.msra.mxu0 %v69
    %280 = vmatprep.subr.mxu0 0.0
    %281 = vmatpush1.msra.mxu0 %v70
    %282 = vmatprep.subr.mxu0 0.0
    %283 = vmatpush1.msra.mxu0 %v71
    %284 = vmatprep.subr.mxu0 0.0
    %285 = vmatpush1.msra.mxu0 %v72
    %286 = vmatprep.mubr.f32.mxu0 %v215
    %287 = vmatmul.mubr.f32.gmra.mrb[0].mxu0 %v214
    %v288 = vpop.f32.mrb[0].mxu0
    %v289 = vadd.f32 %v220, %v288
    %v290 = vpop.f32.mrb[0].mxu0
    %291 = vdwg.mxu0
    %v292 = vmax.f32 %v289, 0.0
    %v294 = vlaneseq
    %v295 = vshrl.u32 %v294, 7
    %v296 = vsub.s32 0, %v295
    %v297 = vrot.slane %v79, %v296
    %v300 = vsel %vm94, %v292, 0
    %302 = vmatprep.subr.mxu0 0.0
    %303 = vmatpush1.msra.mxu0 %v73
    %304 = vmatprep.subr.mxu0 0.0
    %305 = vmatpush1.msra.mxu0 %v74
    %306 = vmatprep.subr.mxu0 0.0
    %307 = vmatpush1.msra.mxu0 %v75
    %308 = vmatprep.subr.mxu0 0.0
    %309 = vmatpush1.msra.mxu0 %v76
    %310 = vmatprep.subr.mxu0 0.0
    %311 = vmatpush1.msra.mxu0 0.0
    %312 = vmatprep.subr.mxu0 0.0
    %313 = vmatpush1.msra.mxu0 0.0
    %314 = vmatprep.subr.mxu0 0.0
    %315 = vmatpush1.msra.mxu0 0.0
    %316 = vmatprep.subr.mxu0 0.0
    %317 = vmatpush1.msra.mxu0 0.0
    %318 = vmatprep.subr.mxu0 0.0
    %319 = vmatpush1.msra.mxu0 0.0
    %320 = vmatprep.subr.mxu0 0.0
    %321 = vmatpush1.msra.mxu0 0.0
    %322 = vmatprep.subr.mxu0 0.0
    %323 = vmatpush1.msra.mxu0 0.0
    %324 = vmatprep.subr.mxu0 0.0
    %325 = vmatpush1.msra.mxu0 0.0
    %326 = vmatprep.subr.mxu0 0.0
    %327 = vmatpush1.msra.mxu0 0.0
    %328 = vmatprep.subr.mxu0 0.0
    %329 = vmatpush1.msra.mxu0 0.0
    %330 = vmatprep.subr.mxu0 0.0
    %331 = vmatpush1.msra.mxu0 0.0
    %332 = vmatprep.subr.mxu0 0.0
    %333 = vmatpush1.msra.mxu0 0.0
    %334 = vmatprep.subr.mxu0 0.0
    %335 = vmatpush1.msra.mxu0 0.0
    %336 = vmatprep.subr.mxu0 0.0
    %337 = vmatpush1.msra.mxu0 0.0
    %338 = vmatprep.subr.mxu0 0.0
    %339 = vmatpush1.msra.mxu0 0.0
    %340 = vmatprep.subr.mxu0 0.0
    %341 = vmatpush1.msra.mxu0 0.0
    %342 = vmatprep.subr.mxu0 0.0
    %343 = vmatpush1.msra.mxu0 0.0
    %344 = vmatprep.subr.mxu0 0.0
    %345 = vmatpush1.msra.mxu0 0.0
    %346 = vmatprep.subr.mxu0 0.0
    %347 = vmatpush1.msra.mxu0 0.0
    %348 = vmatprep.subr.mxu0 0.0
    %349 = vmatpush1.msra.mxu0 0.0
    %350 = vmatprep.subr.mxu0 0.0
    %351 = vmatpush1.msra.mxu0 0.0
    %352 = vmatprep.subr.mxu0 0.0
    %353 = vmatpush1.msra.mxu0 0.0
    %354 = vmatprep.subr.mxu0 0.0
    %355 = vmatpush1.msra.mxu0 0.0
    %356 = vmatprep.subr.mxu0 0.0
    %357 = vmatpush1.msra.mxu0 0.0
    %358 = vmatprep.subr.mxu0 0.0
    %359 = vmatpush1.msra.mxu0 0.0
    %360 = vmatprep.subr.mxu0 0.0
    %361 = vmatpush1.msra.mxu0 0.0
    %362 = vmatprep.subr.mxu0 0.0
    %363 = vmatpush1.msra.mxu0 0.0
    %364 = vmatprep.subr.mxu0 0.0
    %365 = vmatpush1.msra.mxu0 0.0
    %366 = vmatprep.mubr.f32.mxu0 0.0
    %367 = vmatmul.mubr.f32.gmra.mrb[0].mxu0 %v300
    %v368 = vpop.f32.mrb[0].mxu0
    %v369 = vadd.f32 %v297, %v368
    %v370 = vpop.f32.mrb[0].mxu0
    %371 = vdwg.mxu0
    %372 = vst [vmem:[#allocation2] sm:$0xff] %v369
    // Predicated region
    $region38: #{tpu_custom_call.1} parent=1 // pred_check
      _
    $region39: #{tpu_custom_call.1} parent=1 // pred_check_branch
      %374 = sbr.rel (0) target = $region41
    $region40: #{tpu_custom_call.1} parent=1 // pred_region
      %s376 = ssub.s32 128, 128
      %377 = vsyncadd [#allocation3], %s376
      %s379 = sshll.u32 [#allocation2], 4
      %s380 = int_to_ptr.vmem [resolvable:$true] %s379
      %382 = dma.vmem_to_hbm [thread:$0]  %s380, 128, %s9, [#allocation3]
    $region41: #{tpu_custom_call.1} parent=1 // pred_fallthru
      _
    // Predicated region
    $region42: #{tpu_custom_call.1} parent=1 // pred_check
      _
    $region43: #{tpu_custom_call.1} parent=1 // pred_check_branch
      %384 = sbr.rel (0) target = $region45
    $region44: #{tpu_custom_call.1} parent=1 // pred_region
      %385 = dma.done [#allocation3], 128
    $region45: #{tpu_custom_call.1} parent=1 // pred_fallthru
      _
    %386 = vsyncpa [#allocation3], 1

</llo_original>
